<compile_context>
chip_gen: v5e
topology: v5e:2x2
jax: 0.10.0
libtpu: 0.0.40
codegen_flags: <defaults>
</compile_context>

<pallas_src>
import jax
import jax.numpy as jnp
from jax.experimental import pallas as pl
from jax.experimental.pallas import tpu as pltpu

# encoder: 72->64->56->48->40->32->24, decoder: 24->32->40->48->56->64->72
LAYER_DIMS = [72, 64, 56, 48, 40, 32, 24, 32, 40, 48, 56, 64, 72]
NUM_LAYERS = len(LAYER_DIMS) - 1          # 12 Linear layers
IN_DIM = LAYER_DIMS[0]                    # 72
OUT_DIM = LAYER_DIMS[-1]                  # 72
NEG_SLOPE = 0.01                          # PyTorch LeakyReLU default
PAD = 128                                 # lane width (one MXU tile per layer)
MAX_TILE_B = 1024                         # batch tile upper bound


def _round_up(n, m):
    return ((n + m - 1) // m) * m


def _leaky_relu(x):
    # max-form: 2 VALU ops instead of 3 (identical for 0 < slope < 1).
    return jnp.maximum(x, NEG_SLOPE * x)


def aefc_kernel(x_ref, w_ref, b0_ref, o_ref):
    """One batch tile through the whole 12-layer MLP chain.

    x_ref : (tile_b, 72)  f32/bf16   (raw, unpadded input rows)
    w_ref : (12, 128, 128) bf16      (VMEM-resident padded weights;
                                      layers 1..11: row 127 = bias, [127,127]=1)
    b0_ref: (1, 128) f32             (layer-0 bias in lanes 0..63, 1.0 in lane 127)
    o_ref : (tile_b, 72)  f32
    """
    # Layer 0: K=72 matmul directly on the unpadded input (Mosaic zero-pads the
    # contracting dim internally), then the only explicit f32 bias add in the
    # chain, which also seeds the ones-lane (lane 127) used by the bias fold.
    acc = jnp.dot(x_ref[...].astype(jnp.bfloat16), w_ref[0, :IN_DIM, :],
                  preferred_element_type=jnp.float32)        # MXU, f32 acc
    acc = acc + b0_ref[...]
    acc = _leaky_relu(acc)
    h = acc.astype(jnp.bfloat16)

    # Layers 1..11: full 128x128 MXU tiles; bias rides in weight row 127
    # against the activation's ones-lane, so the epilogue is just LeakyReLU.
    for i in range(1, NUM_LAYERS):                            # fully unrolled
        acc = jnp.dot(h, w_ref[i], preferred_element_type=jnp.float32)
        if i < NUM_LAYERS - 1:                                # no act after last
            acc = _leaky_relu(acc)
            h = acc.astype(jnp.bfloat16)

    o_ref[...] = acc[:, :OUT_DIM]                             # drop pad lanes


def prepare_params(weights, biases):
    """One-time parameter prep (hoisted out of the per-call hot path).

    weights[i]: (in_i, out_i) (already transposed vs. torch), biases[i]: (out_i,)
    Returns:
      w_stack: (12, 128, 128) bf16 — zero-padded weights; for layers >= 1,
               row 127 holds the bias and W[127,127] = 1 (ones-lane propagation).
      b0_row : (1, 128) f32 — layer-0 bias (lanes 0..out_0-1) + 1.0 at lane 127.
    """
    w_stack = jnp.zeros((NUM_LAYERS, PAD, PAD), jnp.float32)
    for i, (w, b) in enumerate(zip(weights, biases)):
        din, dout = w.shape
        w_stack = w_stack.at[i, :din, :dout].set(w)
        if i > 0:
            w_stack = w_stack.at[i, PAD - 1, :dout].set(b)    # folded bias row
            w_stack = w_stack.at[i, PAD - 1, PAD - 1].set(1.0)  # keep ones-lane
    b0_row = jnp.zeros((1, PAD), jnp.float32)
    b0_row = b0_row.at[0, :biases[0].shape[0]].set(biases[0])
    b0_row = b0_row.at[0, PAD - 1].set(1.0)                   # ones-lane seed
    return w_stack.astype(jnp.bfloat16), b0_row


def _compute_tile_b(B):
    # Prefer >= 2 grid steps (so both v7x TensorCores get work), cap at
    # MAX_TILE_B to amortize the ~0.35us per-grid-step overhead, and keep a
    # multiple of 16 sublanes (bf16-friendly; also satisfies the 8-row rule).
    tile = _round_up(pl.cdiv(B, 2), 16)
    return int(max(16, min(MAX_TILE_B, tile)))


@jax.jit
def aefc_forward(x, w_stack, b0_row):
    """x: (B, 72) f32 (bf16 also accepted).  Returns (B, 72) f32."""
    B = x.shape[0]
    tile_b = _compute_tile_b(B)
    grid = (pl.cdiv(B, tile_b),)          # ragged last block: OOB writes dropped

    cost = pl.CostEstimate(
        flops=2 * B * PAD * PAD * NUM_LAYERS,
        transcendentals=0,
        bytes_accessed=(B * IN_DIM * x.dtype.itemsize
                        + B * OUT_DIM * 4
                        + w_stack.size * w_stack.dtype.itemsize
                        + b0_row.size * 4),
    )

    return pl.pallas_call(
        aefc_kernel,
        out_shape=jax.ShapeDtypeStruct((B, OUT_DIM), jnp.float32),
        grid=grid,
        in_specs=[
            pl.BlockSpec((tile_b, IN_DIM), lambda i: (i, 0)),            # x tile
            pl.BlockSpec((NUM_LAYERS, PAD, PAD), lambda i: (0, 0, 0)),   # weights (resident)
            pl.BlockSpec((1, PAD), lambda i: (0, 0)),                    # layer-0 bias row
        ],
        out_specs=pl.BlockSpec((tile_b, OUT_DIM), lambda i: (i, 0)),
        compiler_params=pltpu.CompilerParams(
            dimension_semantics=("parallel",),    # shards across v7x's two TCs
            vmem_limit_bytes=32 * 1024 * 1024,
        ),
        cost_estimate=cost,
    )(x, w_stack, b0_row)


def init_params(key):
    """Deterministic synthetic parameters (PyTorch-Linear-like uniform init)."""
    weights, biases = [], []
    for i in range(NUM_LAYERS):
        fan_in, fan_out = LAYER_DIMS[i], LAYER_DIMS[i + 1]
        key, kw, kb = jax.random.split(key, 3)
        bound = 1.0 / jnp.sqrt(fan_in)
        # stored pre-transposed: (in, out)  <=>  torch W.T
        w = jax.random.uniform(kw, (fan_in, fan_out), jnp.float32, -bound, bound)
        b = jax.random.uniform(kb, (fan_out,), jnp.float32, -bound, bound)
        weights.append(w)
        biases.append(b)
    return weights, biases


def reference_forward_f32(x, weights, biases):
    """Pure f32 reference (matches the PyTorch module exactly)."""
    h = x
    for i in range(NUM_LAYERS):
        h = h @ weights[i] + biases[i]
        if i < NUM_LAYERS - 1:
            h = _leaky_relu(h)
    return h


def reference_forward_bf16(x, weights, biases):
    """Reference mimicking the kernel recipe: bf16 matmul inputs, f32 accum,
    biases bf16-rounded for layers >= 1 (they ride inside the bf16 weight)."""
    h = x.astype(jnp.bfloat16)
    for i in range(NUM_LAYERS):
        w = weights[i].astype(jnp.bfloat16)
        b = biases[i] if i == 0 else biases[i].astype(jnp.bfloat16).astype(jnp.float32)
        acc = jnp.dot(h, w, preferred_element_type=jnp.float32) + b
        if i < NUM_LAYERS - 1:
            acc = _leaky_relu(acc)
            h = acc.astype(jnp.bfloat16)
    return acc


if __name__ == "__main__":
    key = jax.random.PRNGKey(0)
    key, kx1, kx2 = jax.random.split(key, 3)
    weights, biases = init_params(key)
    w_stack, b0_row = prepare_params(weights, biases)   # one-time prep

    # B=8: single ragged block; B=260: 2-step grid with ragged last block.
    for B, kx in ((8, kx1), (260, kx2)):
        x = jax.random.normal(kx, (B, 72), jnp.float32)

        out = jax.block_until_ready(aefc_forward(x, w_stack, b0_row))
        assert out.shape == (B, 72), out.shape

        # Tight check vs a reference using the identical bf16/f32 matmul recipe.
        ref_bf16 = reference_forward_bf16(x, weights, biases)
        assert jnp.allclose(out, ref_bf16, atol=2e-3, rtol=2e-3), (
            f"B={B} max err vs bf16 ref: {jnp.max(jnp.abs(out - ref_bf16))}")

        # Loose sanity check vs the exact f32 module semantics.
        ref_f32 = reference_forward_f32(x, weights, biases)
        assert jnp.allclose(out, ref_f32, atol=5e-2, rtol=5e-2), (
            f"B={B} max err vs f32 ref: {jnp.max(jnp.abs(out - ref_f32))}")

    print("KERNEL_OK")
</pallas_src>

<mosaic_0001>
module attributes {stable_mosaic.version = 11 : i64} {
  func.func @aefc_kernel(%arg0: i32, %arg1: memref<16x72xf32, #tpu.memory_space<vmem>>, %arg2: memref<12x128x128xbf16, #tpu.memory_space<vmem>>, %arg3: memref<1x128xf32, #tpu.memory_space<vmem>>, %arg4: memref<16x72xf32, #tpu.memory_space<vmem>>) attributes {dimension_semantics = [#tpu.dimension_semantics<parallel>], iteration_bounds = array<i64: 1>, scalar_prefetch = 0 : i64, scratch_operands = 0 : i64, tpu.core_type = #tpu.core_type<tc>, window_params = [{transform_indices = @transform_0, window_bounds = array<i64: 16, 72>}, {pipeline_mode = #tpu.pipeline_mode<synchronous>, transform_indices = @transform_1, window_bounds = array<i64: 12, 128, 128>}, {pipeline_mode = #tpu.pipeline_mode<synchronous>, transform_indices = @transform_2, window_bounds = array<i64: 1, 128>}, {transform_indices = @transform_3, window_bounds = array<i64: 16, 72>}]} {
    %c0 = arith.constant 0 : index
    %c0_0 = arith.constant 0 : index
    %0 = vector.load %arg1[%c0, %c0_0] : memref<16x72xf32, #tpu.memory_space<vmem>>, vector<16x72xf32>
    %1 = arith.truncf %0 : vector<16x72xf32> to vector<16x72xbf16>
    %c0_1 = arith.constant 0 : index
    %c0_2 = arith.constant 0 : index
    %c0_3 = arith.constant 0 : index
    %2 = vector.load %arg2[%c0_1, %c0_2, %c0_3] : memref<12x128x128xbf16, #tpu.memory_space<vmem>>, vector<1x72x128xbf16>
    %3 = vector.shape_cast %2 : vector<1x72x128xbf16> to vector<72x128xbf16>
    %cst = arith.constant dense<0.000000e+00> : vector<16x128xf32>
    %4 = tpu.matmul %1, %3, %cst {dimension_numbers = #tpu.dot_dimension_numbers<[1], [0], [0], [1], [0, 0, 1, 1], [], []>} : vector<16x72xbf16>, vector<72x128xbf16>, vector<16x128xf32> -> vector<16x128xf32>
    %c0_4 = arith.constant 0 : index
    %c0_5 = arith.constant 0 : index
    %5 = vector.load %arg3[%c0_4, %c0_5] : memref<1x128xf32, #tpu.memory_space<vmem>>, vector<1x128xf32>
    %6 = vector.broadcast %5 : vector<1x128xf32> to vector<16x128xf32>
    %7 = arith.addf %4, %6 : vector<16x128xf32>
    %cst_6 = arith.constant 0.00999999977 : f32
    %8 = vector.broadcast %cst_6 : f32 to vector<16x128xf32>
    %9 = arith.mulf %8, %7 : vector<16x128xf32>
    %10 = arith.maximumf %7, %9 : vector<16x128xf32>
    %11 = arith.truncf %10 : vector<16x128xf32> to vector<16x128xbf16>
    %c1 = arith.constant 1 : index
    %c0_7 = arith.constant 0 : index
    %c0_8 = arith.constant 0 : index
    %12 = vector.load %arg2[%c1, %c0_7, %c0_8] : memref<12x128x128xbf16, #tpu.memory_space<vmem>>, vector<1x128x128xbf16>
    %13 = vector.shape_cast %12 : vector<1x128x128xbf16> to vector<128x128xbf16>
    %cst_9 = arith.constant dense<0.000000e+00> : vector<16x128xf32>
    %14 = tpu.matmul %11, %13, %cst_9 {dimension_numbers = #tpu.dot_dimension_numbers<[1], [0], [0], [1], [0, 0, 1, 1], [], []>} : vector<16x128xbf16>, vector<128x128xbf16>, vector<16x128xf32> -> vector<16x128xf32>
    %cst_10 = arith.constant 0.00999999977 : f32
    %15 = vector.broadcast %cst_10 : f32 to vector<16x128xf32>
    %16 = arith.mulf %15, %14 : vector<16x128xf32>
    %17 = arith.maximumf %14, %16 : vector<16x128xf32>
    %18 = arith.truncf %17 : vector<16x128xf32> to vector<16x128xbf16>
    %c2 = arith.constant 2 : index
    %c0_11 = arith.constant 0 : index
    %c0_12 = arith.constant 0 : index
    %19 = vector.load %arg2[%c2, %c0_11, %c0_12] : memref<12x128x128xbf16, #tpu.memory_space<vmem>>, vector<1x128x128xbf16>
    %20 = vector.shape_cast %19 : vector<1x128x128xbf16> to vector<128x128xbf16>
    %cst_13 = arith.constant dense<0.000000e+00> : vector<16x128xf32>
    %21 = tpu.matmul %18, %20, %cst_13 {dimension_numbers = #tpu.dot_dimension_numbers<[1], [0], [0], [1], [0, 0, 1, 1], [], []>} : vector<16x128xbf16>, vector<128x128xbf16>, vector<16x128xf32> -> vector<16x128xf32>
    %cst_14 = arith.constant 0.00999999977 : f32
    %22 = vector.broadcast %cst_14 : f32 to vector<16x128xf32>
    %23 = arith.mulf %22, %21 : vector<16x128xf32>
    %24 = arith.maximumf %21, %23 : vector<16x128xf32>
    %25 = arith.truncf %24 : vector<16x128xf32> to vector<16x128xbf16>
    %c3 = arith.constant 3 : index
    %c0_15 = arith.constant 0 : index
    %c0_16 = arith.constant 0 : index
    %26 = vector.load %arg2[%c3, %c0_15, %c0_16] : memref<12x128x128xbf16, #tpu.memory_space<vmem>>, vector<1x128x128xbf16>
    %27 = vector.shape_cast %26 : vector<1x128x128xbf16> to vector<128x128xbf16>
    %cst_17 = arith.constant dense<0.000000e+00> : vector<16x128xf32>
    %28 = tpu.matmul %25, %27, %cst_17 {dimension_numbers = #tpu.dot_dimension_numbers<[1], [0], [0], [1], [0, 0, 1, 1], [], []>} : vector<16x128xbf16>, vector<128x128xbf16>, vector<16x128xf32> -> vector<16x128xf32>
    %cst_18 = arith.constant 0.00999999977 : f32
    %29 = vector.broadcast %cst_18 : f32 to vector<16x128xf32>
    %30 = arith.mulf %29, %28 : vector<16x128xf32>
    %31 = arith.maximumf %28, %30 : vector<16x128xf32>
    %32 = arith.truncf %31 : vector<16x128xf32> to vector<16x128xbf16>
    %c4 = arith.constant 4 : index
    %c0_19 = arith.constant 0 : index
    %c0_20 = arith.constant 0 : index
    %33 = vector.load %arg2[%c4, %c0_19, %c0_20] : memref<12x128x128xbf16, #tpu.memory_space<vmem>>, vector<1x128x128xbf16>
    %34 = vector.shape_cast %33 : vector<1x128x128xbf16> to vector<128x128xbf16>
    %cst_21 = arith.constant dense<0.000000e+00> : vector<16x128xf32>
    %35 = tpu.matmul %32, %34, %cst_21 {dimension_numbers = #tpu.dot_dimension_numbers<[1], [0], [0], [1], [0, 0, 1, 1], [], []>} : vector<16x128xbf16>, vector<128x128xbf16>, vector<16x128xf32> -> vector<16x128xf32>
    %cst_22 = arith.constant 0.00999999977 : f32
    %36 = vector.broadcast %cst_22 : f32 to vector<16x128xf32>
    %37 = arith.mulf %36, %35 : vector<16x128xf32>
    %38 = arith.maximumf %35, %37 : vector<16x128xf32>
    %39 = arith.truncf %38 : vector<16x128xf32> to vector<16x128xbf16>
    %c5 = arith.constant 5 : index
    %c0_23 = arith.constant 0 : index
    %c0_24 = arith.constant 0 : index
    %40 = vector.load %arg2[%c5, %c0_23, %c0_24] : memref<12x128x128xbf16, #tpu.memory_space<vmem>>, vector<1x128x128xbf16>
    %41 = vector.shape_cast %40 : vector<1x128x128xbf16> to vector<128x128xbf16>
    %cst_25 = arith.constant dense<0.000000e+00> : vector<16x128xf32>
    %42 = tpu.matmul %39, %41, %cst_25 {dimension_numbers = #tpu.dot_dimension_numbers<[1], [0], [0], [1], [0, 0, 1, 1], [], []>} : vector<16x128xbf16>, vector<128x128xbf16>, vector<16x128xf32> -> vector<16x128xf32>
    %cst_26 = arith.constant 0.00999999977 : f32
    %43 = vector.broadcast %cst_26 : f32 to vector<16x128xf32>
    %44 = arith.mulf %43, %42 : vector<16x128xf32>
    %45 = arith.maximumf %42, %44 : vector<16x128xf32>
    %46 = arith.truncf %45 : vector<16x128xf32> to vector<16x128xbf16>
    %c6 = arith.constant 6 : index
    %c0_27 = arith.constant 0 : index
    %c0_28 = arith.constant 0 : index
    %47 = vector.load %arg2[%c6, %c0_27, %c0_28] : memref<12x128x128xbf16, #tpu.memory_space<vmem>>, vector<1x128x128xbf16>
    %48 = vector.shape_cast %47 : vector<1x128x128xbf16> to vector<128x128xbf16>
    %cst_29 = arith.constant dense<0.000000e+00> : vector<16x128xf32>
    %49 = tpu.matmul %46, %48, %cst_29 {dimension_numbers = #tpu.dot_dimension_numbers<[1], [0], [0], [1], [0, 0, 1, 1], [], []>} : vector<16x128xbf16>, vector<128x128xbf16>, vector<16x128xf32> -> vector<16x128xf32>
    %cst_30 = arith.constant 0.00999999977 : f32
    %50 = vector.broadcast %cst_30 : f32 to vector<16x128xf32>
    %51 = arith.mulf %50, %49 : vector<16x128xf32>
    %52 = arith.maximumf %49, %51 : vector<16x128xf32>
    %53 = arith.truncf %52 : vector<16x128xf32> to vector<16x128xbf16>
    %c7 = arith.constant 7 : index
    %c0_31 = arith.constant 0 : index
    %c0_32 = arith.constant 0 : index
    %54 = vector.load %arg2[%c7, %c0_31, %c0_32] : memref<12x128x128xbf16, #tpu.memory_space<vmem>>, vector<1x128x128xbf16>
    %55 = vector.shape_cast %54 : vector<1x128x128xbf16> to vector<128x128xbf16>
    %cst_33 = arith.constant dense<0.000000e+00> : vector<16x128xf32>
    %56 = tpu.matmul %53, %55, %cst_33 {dimension_numbers = #tpu.dot_dimension_numbers<[1], [0], [0], [1], [0, 0, 1, 1], [], []>} : vector<16x128xbf16>, vector<128x128xbf16>, vector<16x128xf32> -> vector<16x128xf32>
    %cst_34 = arith.constant 0.00999999977 : f32
    %57 = vector.broadcast %cst_34 : f32 to vector<16x128xf32>
    %58 = arith.mulf %57, %56 : vector<16x128xf32>
    %59 = arith.maximumf %56, %58 : vector<16x128xf32>
    %60 = arith.truncf %59 : vector<16x128xf32> to vector<16x128xbf16>
    %c8 = arith.constant 8 : index
    %c0_35 = arith.constant 0 : index
    %c0_36 = arith.constant 0 : index
    %61 = vector.load %arg2[%c8, %c0_35, %c0_36] : memref<12x128x128xbf16, #tpu.memory_space<vmem>>, vector<1x128x128xbf16>
    %62 = vector.shape_cast %61 : vector<1x128x128xbf16> to vector<128x128xbf16>
    %cst_37 = arith.constant dense<0.000000e+00> : vector<16x128xf32>
    %63 = tpu.matmul %60, %62, %cst_37 {dimension_numbers = #tpu.dot_dimension_numbers<[1], [0], [0], [1], [0, 0, 1, 1], [], []>} : vector<16x128xbf16>, vector<128x128xbf16>, vector<16x128xf32> -> vector<16x128xf32>
    %cst_38 = arith.constant 0.00999999977 : f32
    %64 = vector.broadcast %cst_38 : f32 to vector<16x128xf32>
    %65 = arith.mulf %64, %63 : vector<16x128xf32>
    %66 = arith.maximumf %63, %65 : vector<16x128xf32>
    %67 = arith.truncf %66 : vector<16x128xf32> to vector<16x128xbf16>
    %c9 = arith.constant 9 : index
    %c0_39 = arith.constant 0 : index
    %c0_40 = arith.constant 0 : index
    %68 = vector.load %arg2[%c9, %c0_39, %c0_40] : memref<12x128x128xbf16, #tpu.memory_space<vmem>>, vector<1x128x128xbf16>
    %69 = vector.shape_cast %68 : vector<1x128x128xbf16> to vector<128x128xbf16>
    %cst_41 = arith.constant dense<0.000000e+00> : vector<16x128xf32>
    %70 = tpu.matmul %67, %69, %cst_41 {dimension_numbers = #tpu.dot_dimension_numbers<[1], [0], [0], [1], [0, 0, 1, 1], [], []>} : vector<16x128xbf16>, vector<128x128xbf16>, vector<16x128xf32> -> vector<16x128xf32>
    %cst_42 = arith.constant 0.00999999977 : f32
    %71 = vector.broadcast %cst_42 : f32 to vector<16x128xf32>
    %72 = arith.mulf %71, %70 : vector<16x128xf32>
    %73 = arith.maximumf %70, %72 : vector<16x128xf32>
    %74 = arith.truncf %73 : vector<16x128xf32> to vector<16x128xbf16>
    %c10 = arith.constant 10 : index
    %c0_43 = arith.constant 0 : index
    %c0_44 = arith.constant 0 : index
    %75 = vector.load %arg2[%c10, %c0_43, %c0_44] : memref<12x128x128xbf16, #tpu.memory_space<vmem>>, vector<1x128x128xbf16>
    %76 = vector.shape_cast %75 : vector<1x128x128xbf16> to vector<128x128xbf16>
    %cst_45 = arith.constant dense<0.000000e+00> : vector<16x128xf32>
    %77 = tpu.matmul %74, %76, %cst_45 {dimension_numbers = #tpu.dot_dimension_numbers<[1], [0], [0], [1], [0, 0, 1, 1], [], []>} : vector<16x128xbf16>, vector<128x128xbf16>, vector<16x128xf32> -> vector<16x128xf32>
    %cst_46 = arith.constant 0.00999999977 : f32
    %78 = vector.broadcast %cst_46 : f32 to vector<16x128xf32>
    %79 = arith.mulf %78, %77 : vector<16x128xf32>
    %80 = arith.maximumf %77, %79 : vector<16x128xf32>
    %81 = arith.truncf %80 : vector<16x128xf32> to vector<16x128xbf16>
    %c11 = arith.constant 11 : index
    %c0_47 = arith.constant 0 : index
    %c0_48 = arith.constant 0 : index
    %82 = vector.load %arg2[%c11, %c0_47, %c0_48] : memref<12x128x128xbf16, #tpu.memory_space<vmem>>, vector<1x128x128xbf16>
    %83 = vector.shape_cast %82 : vector<1x128x128xbf16> to vector<128x128xbf16>
    %cst_49 = arith.constant dense<0.000000e+00> : vector<16x128xf32>
    %84 = tpu.matmul %81, %83, %cst_49 {dimension_numbers = #tpu.dot_dimension_numbers<[1], [0], [0], [1], [0, 0, 1, 1], [], []>} : vector<16x128xbf16>, vector<128x128xbf16>, vector<16x128xf32> -> vector<16x128xf32>
    %85 = vector.extract_strided_slice %84 {offsets = [0, 0], sizes = [16, 72], strides = [1, 1]} : vector<16x128xf32> to vector<16x72xf32>
    %c0_50 = arith.constant 0 : index
    %c0_51 = arith.constant 0 : index
    %86 = vector.load %arg4[%c0_50, %c0_51] : memref<16x72xf32, #tpu.memory_space<vmem>>, vector<16x72xf32>
    tpu.vector_store %arg4[%c0_50, %c0_51], %85 {strides = array<i32>} : memref<16x72xf32, #tpu.memory_space<vmem>>, vector<16x72xf32>,
    return
  }
  func.func @transform_0(%arg0: i32) -> (i32, i32) {
    %c0_i32 = arith.constant 0 : i32
    %c0_i32_0 = arith.constant 0 : i32
    return %arg0, %c0_i32 : i32, i32
  }
  func.func @transform_1(%arg0: i32) -> (i32, i32, i32) {
    %c0_i32 = arith.constant 0 : i32
    %c0_i32_0 = arith.constant 0 : i32
    %c0_i32_1 = arith.constant 0 : i32
    %c0_i32_2 = arith.constant 0 : i32
    return %c0_i32, %c0_i32_0, %c0_i32_1 : i32, i32, i32
  }
  func.func @transform_2(%arg0: i32) -> (i32, i32) {
    %c0_i32 = arith.constant 0 : i32
    %c0_i32_0 = arith.constant 0 : i32
    %c0_i32_1 = arith.constant 0 : i32
    return %c0_i32, %c0_i32_0 : i32, i32
  }
  func.func @transform_3(%arg0: i32) -> (i32, i32) {
    %c0_i32 = arith.constant 0 : i32
    %c0_i32_0 = arith.constant 0 : i32
    return %arg0, %c0_i32 : i32, i32
  }
}

</mosaic_0001>

<llo_original>
// kernel: aefc_forward.1
$region0: #{aefc_forward.1}
  #allocation0 [shape = 'u32[]', space=smem, size = 0x4, offset = 0x4, fixed_abs, tag = 'smem constant byte address 0x4 - core index']
  #allocation1 [shape = 'u32[72,128]{1,0:T(1,128)}', space=vmem, size = 0x9000, scoped, tag = 'internal scratch']
  %s0 = inlined_call_operand.hbm [shape: f32[8,72], index: 0, kind: input, shape index: {}]
  %s1 = inlined_call_operand.hbm [shape: bf16[12,128,128], index: 1, kind: input, shape index: {}]
  %s2 = inlined_call_operand.vmem [shape: f32[1,128], index: 2, kind: input, shape index: {}]
  %s3 = inlined_call_operand.hbm [shape: f32[8,72], index: 3, kind: output, shape index: {}]
  %s4 = sld [smem:[#allocation0]]
  $region30: #{aefc_forward.1} parent=0
    _
  %s6 = ssub.s32 1, %s4
  %s7 = scalar_select 0, %s6, %s4
  $region1: #{aefc_forward.1} parent=0
    #allocation2 [shape = 'u8[8192]{0}', space=vmem, size = 0x2000, scoped, tag = 'input window, operand 0, single buffered']
    #allocation3 [shape = 's32[1]{0}', space=sflag, size = 0x4, scoped, tag = 'scoped memory for aefc_forward.1']
    #allocation4 [shape = 's32[1]{0}', space=sflag, size = 0x4, scoped, tag = 'scoped memory for aefc_forward.1']
    #allocation5 [shape = 'u8[393216]{0}', space=vmem, size = 0x60000, scoped, tag = 'input window, operand 1, single buffered']
    #allocation6 [shape = 's32[1]{0}', space=sflag, size = 0x4, scoped, tag = 'scoped memory for aefc_forward.1']
    #allocation7 [shape = 'u8[8192]{0}', space=vmem, size = 0x2000, scoped, tag = 'output window, operand 0, single buffered']
    %8 = vsyncpa [#allocation3], 0
    %9 = vsyncpa [#allocation6], 0
    %10 = vsyncpa [#allocation4], 0
    // Predicated region
    $region2: #{aefc_forward.1} parent=1 // pred_check
      _
    $region3: #{aefc_forward.1} parent=1 // pred_check_branch
      %12 = sbr.rel (0) target = $region5
    $region4: #{aefc_forward.1} parent=1 // pred_region
      %14 = vsyncadd [#allocation3], 128
      %s15 = sshll.u32 %s0, 4
      %s16 = int_to_ptr.hbm [resolvable:$true] %s15
      %s17 = sshll.u32 [#allocation2], 4
      %s18 = int_to_ptr.vmem [resolvable:$true] %s17
      %23 = dma.hbm_to_vmem [thread:$0]  %s16, 128, %s18, [#allocation3], 128, 128, 8
    $region5: #{aefc_forward.1} parent=1 // pred_fallthru
      _
    // Predicated region
    $region6: #{aefc_forward.1} parent=1 // pred_check
      _
    $region7: #{aefc_forward.1} parent=1 // pred_check_branch
      %25 = sbr.rel (0) target = $region9
    $region8: #{aefc_forward.1} parent=1 // pred_region
      %27 = vsyncadd [#allocation6], 0
      %s28 = sshll.u32 %s1, 4
      %s29 = int_to_ptr.hbm [resolvable:$true] %s28
      %s30 = sshll.u32 [#allocation5], 4
      %s31 = int_to_ptr.vmem [resolvable:$true] %s30
      %36 = dma.hbm_to_vmem [thread:$0]  %s29, 12288, %s31, [#allocation6], 64, 64, 4
    $region9: #{aefc_forward.1} parent=1 // pred_fallthru
      _
    // Predicated region
    $region10: #{aefc_forward.1} parent=1 // pred_check
      _
    $region11: #{aefc_forward.1} parent=1 // pred_check_branch
      %38 = sbr.rel (0) target = $region13
    $region12: #{aefc_forward.1} parent=1 // pred_region
      _
    $region13: #{aefc_forward.1} parent=1 // pred_fallthru
      _
    // Predicated region
    $region14: #{aefc_forward.1} parent=1 // pred_check
      _
    $region15: #{aefc_forward.1} parent=1 // pred_check_branch
      %40 = sbr.rel (0) target = $region17
    $region16: #{aefc_forward.1} parent=1 // pred_region
      %42 = dma.done [#allocation3], 256
    $region17: #{aefc_forward.1} parent=1 // pred_fallthru
      _
    // Predicated region
    $region18: #{aefc_forward.1} parent=1 // pred_check
      _
    $region19: #{aefc_forward.1} parent=1 // pred_check_branch
      %44 = sbr.rel (0) target = $region21
    $region20: #{aefc_forward.1} parent=1 // pred_region
      %46 = dma.done [#allocation6], 12288
    $region21: #{aefc_forward.1} parent=1 // pred_fallthru
      _
    %v48 = vld [vmem:[#allocation2] sm:$0xff]
    %v49 = vld [vmem:[#allocation2 + $0x8] sm:$0xff]
    %v50 = vpack.c.bf16 %v49, %v48
    %v51 = vld [vmem:[#allocation5] sm:$0xf]
    %v52 = vld [vmem:[#allocation5 + $0x4] sm:$0xf]
    %v53 = vld [vmem:[#allocation5 + $0x8] sm:$0xf]
    %v54 = vld [vmem:[#allocation5 + $0xc] sm:$0xf]
    %v55 = vld [vmem:[#allocation5 + $0x10] sm:$0xf]
    %v56 = vld [vmem:[#allocation5 + $0x14] sm:$0xf]
    %v57 = vld [vmem:[#allocation5 + $0x18] sm:$0xf]
    %v58 = vld [vmem:[#allocation5 + $0x1c] sm:$0xf]
    %v59 = vld [vmem:[#allocation5 + $0x20] sm:$0xf]
    %v60 = vld [vmem:[%s2] sm:$0x1]
    %v62 = vperm.slane %v60, 0
    %v73 = vunpack.c.l.b16 %v51
    %v74 = vunpack.c.l.b16 %v52
    %v75 = vunpack.c.l.b16 %v53
    %v76 = vunpack.c.l.b16 %v54
    %v77 = vunpack.c.l.b16 %v55
    %v78 = vunpack.c.l.b16 %v56
    %v79 = vunpack.c.l.b16 %v57
    %v80 = vunpack.c.l.b16 %v58
    %v81 = vunpack.c.l.b16 %v59
    %v82 = vpack.c.b16 %v74, %v73
    %v83 = vpack.c.b16 %v76, %v75
    %v84 = vpack.c.b16 %v78, %v77
    %v85 = vpack.c.b16 %v80, %v79
    %v86 = vpack.c.b16 %v81, %v81
    %vm91 = vcmask 588800
    %v93 = vsel %vm91, %v50, 0
    %vm95 = vcmask 1043456
    %v97 = vsel %vm95, %v86, 0
    %99 = vmatpush.bf16.msra.mxu0 0
    %100 = vmatpush.bf16.msra.mxu0 0
    %101 = vmatpush.bf16.msra.mxu0 0
    %102 = vmatpush.bf16.msra.mxu0 %v97
    %103 = vmatpush.bf16.msra.mxu0 %v85
    %104 = vmatpush.bf16.msra.mxu0 %v84
    %105 = vmatpush.bf16.msra.mxu0 %v83
    %106 = vmatpush.bf16.msra.mxu0 %v82
    %107 = vmatmul.bf16.gmra.mxu0 %v93
    %v108 = vpop.f32.mrf.mxu0
    %v109 = vadd.f32 %v62, %v108
    %v110 = vpop.f32.mrf.mxu0
    %v111 = vadd.f32 %v62, %v110
    %112 = vdwg.mxu0
    %v113 = vmul.f32 %v109, 0.01
    %v114 = vmul.f32 %v111, 0.01
    %v115 = vmax.f32 %v109, %v113
    %v116 = vmax.f32 %v111, %v114
    %v117 = vpack.c.bf16 %v116, %v115
    %s118 = scalar_lea.vmem [#allocation5], 64
    %v119 = vld [vmem:[%s118] sm:$0xf]
    %v120 = vld [vmem:[%s118 + $0x4] sm:$0xf]
    %v121 = vld [vmem:[%s118 + $0x8] sm:$0xf]
    %v122 = vld [vmem:[%s118 + $0xc] sm:$0xf]
    %v123 = vld [vmem:[%s118 + $0x10] sm:$0xf]
    %v124 = vld [vmem:[%s118 + $0x14] sm:$0xf]
    %v125 = vld [vmem:[%s118 + $0x18] sm:$0xf]
    %v126 = vld [vmem:[%s118 + $0x1c] sm:$0xf]
    %v127 = vld [vmem:[%s118 + $0x20] sm:$0xf]
    %v128 = vld [vmem:[%s118 + $0x24] sm:$0xf]
    %v129 = vld [vmem:[%s118 + $0x28] sm:$0xf]
    %v130 = vld [vmem:[%s118 + $0x2c] sm:$0xf]
    %v131 = vld [vmem:[%s118 + $0x30] sm:$0xf]
    %v132 = vld [vmem:[%s118 + $0x34] sm:$0xf]
    %v133 = vld [vmem:[%s118 + $0x38] sm:$0xf]
    %v134 = vld [vmem:[%s118 + $0x3c] sm:$0xf]
    %v151 = vunpack.c.l.b16 %v119
    %v152 = vunpack.c.l.b16 %v120
    %v153 = vunpack.c.l.b16 %v121
    %v154 = vunpack.c.l.b16 %v122
    %v155 = vunpack.c.l.b16 %v123
    %v156 = vunpack.c.l.b16 %v124
    %v157 = vunpack.c.l.b16 %v125
    %v158 = vunpack.c.l.b16 %v126
    %v159 = vunpack.c.l.b16 %v127
    %v160 = vunpack.c.l.b16 %v128
    %v161 = vunpack.c.l.b16 %v129
    %v162 = vunpack.c.l.b16 %v130
    %v163 = vunpack.c.l.b16 %v131
    %v164 = vunpack.c.l.b16 %v132
    %v165 = vunpack.c.l.b16 %v133
    %v166 = vunpack.c.l.b16 %v134
    %v167 = vpack.c.b16 %v152, %v151
    %v168 = vpack.c.b16 %v154, %v153
    %v169 = vpack.c.b16 %v156, %v155
    %v170 = vpack.c.b16 %v158, %v157
    %v171 = vpack.c.b16 %v160, %v159
    %v172 = vpack.c.b16 %v162, %v161
    %v173 = vpack.c.b16 %v164, %v163
    %v174 = vpack.c.b16 %v166, %v165
    %183 = vmatpush.bf16.msra.mxu0 %v174
    %184 = vmatpush.bf16.msra.mxu0 %v173
    %185 = vmatpush.bf16.msra.mxu0 %v172
    %186 = vmatpush.bf16.msra.mxu0 %v171
    %187 = vmatpush.bf16.msra.mxu0 %v170
    %188 = vmatpush.bf16.msra.mxu0 %v169
    %189 = vmatpush.bf16.msra.mxu0 %v168
    %190 = vmatpush.bf16.msra.mxu0 %v167
    %191 = vmatmul.bf16.gmra.mxu0 %v117
    %v192 = vpop.f32.mrf.mxu0
    %v193 = vadd.f32 0.0, %v192
    %v194 = vpop.f32.mrf.mxu0
    %v195 = vadd.f32 0.0, %v194
    %196 = vdwg.mxu0
    %v197 = vmul.f32 %v193, 0.01
    %v198 = vmul.f32 %v195, 0.01
    %v199 = vmax.f32 %v193, %v197
    %v200 = vmax.f32 %v195, %v198
    %v201 = vpack.c.bf16 %v200, %v199
    %s202 = scalar_lea.vmem [#allocation5], 128
    %v203 = vld [vmem:[%s202] sm:$0xf]
    %v204 = vld [vmem:[%s202 + $0x4] sm:$0xf]
    %v205 = vld [vmem:[%s202 + $0x8] sm:$0xf]
    %v206 = vld [vmem:[%s202 + $0xc] sm:$0xf]
    %v207 = vld [vmem:[%s202 + $0x10] sm:$0xf]
    %v208 = vld [vmem:[%s202 + $0x14] sm:$0xf]
    %v209 = vld [vmem:[%s202 + $0x18] sm:$0xf]
    %v210 = vld [vmem:[%s202 + $0x1c] sm:$0xf]
    %v211 = vld [vmem:[%s202 + $0x20] sm:$0xf]
    %v212 = vld [vmem:[%s202 + $0x24] sm:$0xf]
    %v213 = vld [vmem:[%s202 + $0x28] sm:$0xf]
    %v214 = vld [vmem:[%s202 + $0x2c] sm:$0xf]
    %v215 = vld [vmem:[%s202 + $0x30] sm:$0xf]
    %v216 = vld [vmem:[%s202 + $0x34] sm:$0xf]
    %v217 = vld [vmem:[%s202 + $0x38] sm:$0xf]
    %v218 = vld [vmem:[%s202 + $0x3c] sm:$0xf]
    %v235 = vunpack.c.l.b16 %v203
    %v236 = vunpack.c.l.b16 %v204
    %v237 = vunpack.c.l.b16 %v205
    %v238 = vunpack.c.l.b16 %v206
    %v239 = vunpack.c.l.b16 %v207
    %v240 = vunpack.c.l.b16 %v208
    %v241 = vunpack.c.l.b16 %v209
    %v242 = vunpack.c.l.b16 %v210
    %v243 = vunpack.c.l.b16 %v211
    %v244 = vunpack.c.l.b16 %v212
    %v245 = vunpack.c.l.b16 %v213
    %v246 = vunpack.c.l.b16 %v214
    %v247 = vunpack.c.l.b16 %v215
    %v248 = vunpack.c.l.b16 %v216
    %v249 = vunpack.c.l.b16 %v217
    %v250 = vunpack.c.l.b16 %v218
    %v251 = vpack.c.b16 %v236, %v235
    %v252 = vpack.c.b16 %v238, %v237
    %v253 = vpack.c.b16 %v240, %v239
    %v254 = vpack.c.b16 %v242, %v241
    %v255 = vpack.c.b16 %v244, %v243
    %v256 = vpack.c.b16 %v246, %v245
    %v257 = vpack.c.b16 %v248, %v247
    %v258 = vpack.c.b16 %v250, %v249
    %267 = vmatpush.bf16.msra.mxu0 %v258
    %268 = vmatpush.bf16.msra.mxu0 %v257
    %269 = vmatpush.bf16.msra.mxu0 %v256
    %270 = vmatpush.bf16.msra.mxu0 %v255
    %271 = vmatpush.bf16.msra.mxu0 %v254
    %272 = vmatpush.bf16.msra.mxu0 %v253
    %273 = vmatpush.bf16.msra.mxu0 %v252
    %274 = vmatpush.bf16.msra.mxu0 %v251
    %275 = vmatmul.bf16.gmra.mxu0 %v201
    %v276 = vpop.f32.mrf.mxu0
    %v277 = vadd.f32 0.0, %v276
    %v278 = vpop.f32.mrf.mxu0
    %v279 = vadd.f32 0.0, %v278
    %280 = vdwg.mxu0
    %v281 = vmul.f32 %v277, 0.01
    %v282 = vmul.f32 %v279, 0.01
    %v283 = vmax.f32 %v277, %v281
    %v284 = vmax.f32 %v279, %v282
    %v285 = vpack.c.bf16 %v284, %v283
    %s286 = scalar_lea.vmem [#allocation5], 192
    %v287 = vld [vmem:[%s286] sm:$0xf]
    %v288 = vld [vmem:[%s286 + $0x4] sm:$0xf]
    %v289 = vld [vmem:[%s286 + $0x8] sm:$0xf]
    %v290 = vld [vmem:[%s286 + $0xc] sm:$0xf]
    %v291 = vld [vmem:[%s286 + $0x10] sm:$0xf]
    %v292 = vld [vmem:[%s286 + $0x14] sm:$0xf]
    %v293 = vld [vmem:[%s286 + $0x18] sm:$0xf]
    %v294 = vld [vmem:[%s286 + $0x1c] sm:$0xf]
    %v295 = vld [vmem:[%s286 + $0x20] sm:$0xf]
    %v296 = vld [vmem:[%s286 + $0x24] sm:$0xf]
    %v297 = vld [vmem:[%s286 + $0x28] sm:$0xf]
    %v298 = vld [vmem:[%s286 + $0x2c] sm:$0xf]
    %v299 = vld [vmem:[%s286 + $0x30] sm:$0xf]
    %v300 = vld [vmem:[%s286 + $0x34] sm:$0xf]
    %v301 = vld [vmem:[%s286 + $0x38] sm:$0xf]
    %v302 = vld [vmem:[%s286 + $0x3c] sm:$0xf]
    %v319 = vunpack.c.l.b16 %v287
    %v320 = vunpack.c.l.b16 %v288
    %v321 = vunpack.c.l.b16 %v289
    %v322 = vunpack.c.l.b16 %v290
    %v323 = vunpack.c.l.b16 %v291
    %v324 = vunpack.c.l.b16 %v292
    %v325 = vunpack.c.l.b16 %v293
    %v326 = vunpack.c.l.b16 %v294
    %v327 = vunpack.c.l.b16 %v295
    %v328 = vunpack.c.l.b16 %v296
    %v329 = vunpack.c.l.b16 %v297
    %v330 = vunpack.c.l.b16 %v298
    %v331 = vunpack.c.l.b16 %v299
    %v332 = vunpack.c.l.b16 %v300
    %v333 = vunpack.c.l.b16 %v301
    %v334 = vunpack.c.l.b16 %v302
    %v335 = vpack.c.b16 %v320, %v319
    %v336 = vpack.c.b16 %v322, %v321
    %v337 = vpack.c.b16 %v324, %v323
    %v338 = vpack.c.b16 %v326, %v325
    %v339 = vpack.c.b16 %v328, %v327
    %v340 = vpack.c.b16 %v330, %v329
    %v341 = vpack.c.b16 %v332, %v331
    %v342 = vpack.c.b16 %v334, %v333
    %351 = vmatpush.bf16.msra.mxu0 %v342
    %352 = vmatpush.bf16.msra.mxu0 %v341
    %353 = vmatpush.bf16.msra.mxu0 %v340
    %354 = vmatpush.bf16.msra.mxu0 %v339
    %355 = vmatpush.bf16.msra.mxu0 %v338
    %356 = vmatpush.bf16.msra.mxu0 %v337
    %357 = vmatpush.bf16.msra.mxu0 %v336
    %358 = vmatpush.bf16.msra.mxu0 %v335
    %359 = vmatmul.bf16.gmra.mxu0 %v285
    %v360 = vpop.f32.mrf.mxu0
    %v361 = vadd.f32 0.0, %v360
    %v362 = vpop.f32.mrf.mxu0
    %v363 = vadd.f32 0.0, %v362
    %364 = vdwg.mxu0
    %v365 = vmul.f32 %v361, 0.01
    %v366 = vmul.f32 %v363, 0.01
    %v367 = vmax.f32 %v361, %v365
    %v368 = vmax.f32 %v363, %v366
    %v369 = vpack.c.bf16 %v368, %v367
    %s370 = scalar_lea.vmem [#allocation5], 256
    %v371 = vld [vmem:[%s370] sm:$0xf]
    %v372 = vld [vmem:[%s370 + $0x4] sm:$0xf]
    %v373 = vld [vmem:[%s370 + $0x8] sm:$0xf]
    %v374 = vld [vmem:[%s370 + $0xc] sm:$0xf]
    %v375 = vld [vmem:[%s370 + $0x10] sm:$0xf]
    %v376 = vld [vmem:[%s370 + $0x14] sm:$0xf]
    %v377 = vld [vmem:[%s370 + $0x18] sm:$0xf]
    %v378 = vld [vmem:[%s370 + $0x1c] sm:$0xf]
    %v379 = vld [vmem:[%s370 + $0x20] sm:$0xf]
    %v380 = vld [vmem:[%s370 + $0x24] sm:$0xf]
    %v381 = vld [vmem:[%s370 + $0x28] sm:$0xf]
    %v382 = vld [vmem:[%s370 + $0x2c] sm:$0xf]
    %v383 = vld [vmem:[%s370 + $0x30] sm:$0xf]
    %v384 = vld [vmem:[%s370 + $0x34] sm:$0xf]
    %v385 = vld [vmem:[%s370 + $0x38] sm:$0xf]
    %v386 = vld [vmem:[%s370 + $0x3c] sm:$0xf]
    %v403 = vunpack.c.l.b16 %v371
    %v404 = vunpack.c.l.b16 %v372
    %v405 = vunpack.c.l.b16 %v373
    %v406 = vunpack.c.l.b16 %v374
    %v407 = vunpack.c.l.b16 %v375
    %v408 = vunpack.c.l.b16 %v376
    %v409 = vunpack.c.l.b16 %v377
    %v410 = vunpack.c.l.b16 %v378
    %v411 = vunpack.c.l.b16 %v379
    %v412 = vunpack.c.l.b16 %v380
    %v413 = vunpack.c.l.b16 %v381
    %v414 = vunpack.c.l.b16 %v382
    %v415 = vunpack.c.l.b16 %v383
    %v416 = vunpack.c.l.b16 %v384
    %v417 = vunpack.c.l.b16 %v385
    %v418 = vunpack.c.l.b16 %v386
    %v419 = vpack.c.b16 %v404, %v403
    %v420 = vpack.c.b16 %v406, %v405
    %v421 = vpack.c.b16 %v408, %v407
    %v422 = vpack.c.b16 %v410, %v409
    %v423 = vpack.c.b16 %v412, %v411
    %v424 = vpack.c.b16 %v414, %v413
    %v425 = vpack.c.b16 %v416, %v415
    %v426 = vpack.c.b16 %v418, %v417
    %435 = vmatpush.bf16.msra.mxu0 %v426
    %436 = vmatpush.bf16.msra.mxu0 %v425
    %437 = vmatpush.bf16.msra.mxu0 %v424
    %438 = vmatpush.bf16.msra.mxu0 %v423
    %439 = vmatpush.bf16.msra.mxu0 %v422
    %440 = vmatpush.bf16.msra.mxu0 %v421
    %441 = vmatpush.bf16.msra.mxu0 %v420
    %442 = vmatpush.bf16.msra.mxu0 %v419
    %443 = vmatmul.bf16.gmra.mxu0 %v369
    %v444 = vpop.f32.mrf.mxu0
    %v445 = vadd.f32 0.0, %v444
    %v446 = vpop.f32.mrf.mxu0
    %v447 = vadd.f32 0.0, %v446
    %448 = vdwg.mxu0
    %v449 = vmul.f32 %v445, 0.01
    %v450 = vmul.f32 %v447, 0.01
    %v451 = vmax.f32 %v445, %v449
    %v452 = vmax.f32 %v447, %v450
    %v453 = vpack.c.bf16 %v452, %v451
    %s454 = scalar_lea.vmem [#allocation5], 320
    %v455 = vld [vmem:[%s454] sm:$0xf]
    %v456 = vld [vmem:[%s454 + $0x4] sm:$0xf]
    %v457 = vld [vmem:[%s454 + $0x8] sm:$0xf]
    %v458 = vld [vmem:[%s454 + $0xc] sm:$0xf]
    %v459 = vld [vmem:[%s454 + $0x10] sm:$0xf]
    %v460 = vld [vmem:[%s454 + $0x14] sm:$0xf]
    %v461 = vld [vmem:[%s454 + $0x18] sm:$0xf]
    %v462 = vld [vmem:[%s454 + $0x1c] sm:$0xf]
    %v463 = vld [vmem:[%s454 + $0x20] sm:$0xf]
    %v464 = vld [vmem:[%s454 + $0x24] sm:$0xf]
    %v465 = vld [vmem:[%s454 + $0x28] sm:$0xf]
    %v466 = vld [vmem:[%s454 + $0x2c] sm:$0xf]
    %v467 = vld [vmem:[%s454 + $0x30] sm:$0xf]
    %v468 = vld [vmem:[%s454 + $0x34] sm:$0xf]
    %v469 = vld [vmem:[%s454 + $0x38] sm:$0xf]
    %v470 = vld [vmem:[%s454 + $0x3c] sm:$0xf]
    %v487 = vunpack.c.l.b16 %v455
    %v488 = vunpack.c.l.b16 %v456
    %v489 = vunpack.c.l.b16 %v457
    %v490 = vunpack.c.l.b16 %v458
    %v491 = vunpack.c.l.b16 %v459
    %v492 = vunpack.c.l.b16 %v460
    %v493 = vunpack.c.l.b16 %v461
    %v494 = vunpack.c.l.b16 %v462
    %v495 = vunpack.c.l.b16 %v463
    %v496 = vunpack.c.l.b16 %v464
    %v497 = vunpack.c.l.b16 %v465
    %v498 = vunpack.c.l.b16 %v466
    %v499 = vunpack.c.l.b16 %v467
    %v500 = vunpack.c.l.b16 %v468
    %v501 = vunpack.c.l.b16 %v469
    %v502 = vunpack.c.l.b16 %v470
    %v503 = vpack.c.b16 %v488, %v487
    %v504 = vpack.c.b16 %v490, %v489
    %v505 = vpack.c.b16 %v492, %v491
    %v506 = vpack.c.b16 %v494, %v493
    %v507 = vpack.c.b16 %v496, %v495
    %v508 = vpack.c.b16 %v498, %v497
    %v509 = vpack.c.b16 %v500, %v499
    %v510 = vpack.c.b16 %v502, %v501
    %519 = vmatpush.bf16.msra.mxu0 %v510
    %520 = vmatpush.bf16.msra.mxu0 %v509
    %521 = vmatpush.bf16.msra.mxu0 %v508
    %522 = vmatpush.bf16.msra.mxu0 %v507
    %523 = vmatpush.bf16.msra.mxu0 %v506
    %524 = vmatpush.bf16.msra.mxu0 %v505
    %525 = vmatpush.bf16.msra.mxu0 %v504
    %526 = vmatpush.bf16.msra.mxu0 %v503
    %527 = vmatmul.bf16.gmra.mxu0 %v453
    %v528 = vpop.f32.mrf.mxu0
    %v529 = vadd.f32 0.0, %v528
    %v530 = vpop.f32.mrf.mxu0
    %v531 = vadd.f32 0.0, %v530
    %532 = vdwg.mxu0
    %v533 = vmul.f32 %v529, 0.01
    %v534 = vmul.f32 %v531, 0.01
    %v535 = vmax.f32 %v529, %v533
    %v536 = vmax.f32 %v531, %v534
    %v537 = vpack.c.bf16 %v536, %v535
    %s538 = scalar_lea.vmem [#allocation5], 384
    %v539 = vld [vmem:[%s538] sm:$0xf]
    %v540 = vld [vmem:[%s538 + $0x4] sm:$0xf]
    %v541 = vld [vmem:[%s538 + $0x8] sm:$0xf]
    %v542 = vld [vmem:[%s538 + $0xc] sm:$0xf]
    %v543 = vld [vmem:[%s538 + $0x10] sm:$0xf]
    %v544 = vld [vmem:[%s538 + $0x14] sm:$0xf]
    %v545 = vld [vmem:[%s538 + $0x18] sm:$0xf]
    %v546 = vld [vmem:[%s538 + $0x1c] sm:$0xf]
    %v547 = vld [vmem:[%s538 + $0x20] sm:$0xf]
    %v548 = vld [vmem:[%s538 + $0x24] sm:$0xf]
    %v549 = vld [vmem:[%s538 + $0x28] sm:$0xf]
    %v550 = vld [vmem:[%s538 + $0x2c] sm:$0xf]
    %v551 = vld [vmem:[%s538 + $0x30] sm:$0xf]
    %v552 = vld [vmem:[%s538 + $0x34] sm:$0xf]
    %v553 = vld [vmem:[%s538 + $0x38] sm:$0xf]
    %v554 = vld [vmem:[%s538 + $0x3c] sm:$0xf]
    %v571 = vunpack.c.l.b16 %v539
    %v572 = vunpack.c.l.b16 %v540
    %v573 = vunpack.c.l.b16 %v541
    %v574 = vunpack.c.l.b16 %v542
    %v575 = vunpack.c.l.b16 %v543
    %v576 = vunpack.c.l.b16 %v544
    %v577 = vunpack.c.l.b16 %v545
    %v578 = vunpack.c.l.b16 %v546
    %v579 = vunpack.c.l.b16 %v547
    %v580 = vunpack.c.l.b16 %v548
    %v581 = vunpack.c.l.b16 %v549
    %v582 = vunpack.c.l.b16 %v550
    %v583 = vunpack.c.l.b16 %v551
    %v584 = vunpack.c.l.b16 %v552
    %v585 = vunpack.c.l.b16 %v553
    %v586 = vunpack.c.l.b16 %v554
    %v587 = vpack.c.b16 %v572, %v571
    %v588 = vpack.c.b16 %v574, %v573
    %v589 = vpack.c.b16 %v576, %v575
    %v590 = vpack.c.b16 %v578, %v577
    %v591 = vpack.c.b16 %v580, %v579
    %v592 = vpack.c.b16 %v582, %v581
    %v593 = vpack.c.b16 %v584, %v583
    %v594 = vpack.c.b16 %v586, %v585
    %603 = vmatpush.bf16.msra.mxu0 %v594
    %604 = vmatpush.bf16.msra.mxu0 %v593
    %605 = vmatpush.bf16.msra.mxu0 %v592
    %606 = vmatpush.bf16.msra.mxu0 %v591
    %607 = vmatpush.bf16.msra.mxu0 %v590
    %608 = vmatpush.bf16.msra.mxu0 %v589
    %609 = vmatpush.bf16.msra.mxu0 %v588
    %610 = vmatpush.bf16.msra.mxu0 %v587
    %611 = vmatmul.bf16.gmra.mxu0 %v537
    %v612 = vpop.f32.mrf.mxu0
    %v613 = vadd.f32 0.0, %v612
    %v614 = vpop.f32.mrf.mxu0
    %v615 = vadd.f32 0.0, %v614
    %616 = vdwg.mxu0
    %v617 = vmul.f32 %v613, 0.01
    %v618 = vmul.f32 %v615, 0.01
    %v619 = vmax.f32 %v613, %v617
    %v620 = vmax.f32 %v615, %v618
    %v621 = vpack.c.bf16 %v620, %v619
    %s622 = scalar_lea.vmem [#allocation5], 448
    %v623 = vld [vmem:[%s622] sm:$0xf]
    %v624 = vld [vmem:[%s622 + $0x4] sm:$0xf]
    %v625 = vld [vmem:[%s622 + $0x8] sm:$0xf]
    %v626 = vld [vmem:[%s622 + $0xc] sm:$0xf]
    %v627 = vld [vmem:[%s622 + $0x10] sm:$0xf]
    %v628 = vld [vmem:[%s622 + $0x14] sm:$0xf]
    %v629 = vld [vmem:[%s622 + $0x18] sm:$0xf]
    %v630 = vld [vmem:[%s622 + $0x1c] sm:$0xf]
    %v631 = vld [vmem:[%s622 + $0x20] sm:$0xf]
    %v632 = vld [vmem:[%s622 + $0x24] sm:$0xf]
    %v633 = vld [vmem:[%s622 + $0x28] sm:$0xf]
    %v634 = vld [vmem:[%s622 + $0x2c] sm:$0xf]
    %v635 = vld [vmem:[%s622 + $0x30] sm:$0xf]
    %v636 = vld [vmem:[%s622 + $0x34] sm:$0xf]
    %v637 = vld [vmem:[%s622 + $0x38] sm:$0xf]
    %v638 = vld [vmem:[%s622 + $0x3c] sm:$0xf]
    %v655 = vunpack.c.l.b16 %v623
    %v656 = vunpack.c.l.b16 %v624
    %v657 = vunpack.c.l.b16 %v625
    %v658 = vunpack.c.l.b16 %v626
    %v659 = vunpack.c.l.b16 %v627
    %v660 = vunpack.c.l.b16 %v628
    %v661 = vunpack.c.l.b16 %v629
    %v662 = vunpack.c.l.b16 %v630
    %v663 = vunpack.c.l.b16 %v631
    %v664 = vunpack.c.l.b16 %v632
    %v665 = vunpack.c.l.b16 %v633
    %v666 = vunpack.c.l.b16 %v634
    %v667 = vunpack.c.l.b16 %v635
    %v668 = vunpack.c.l.b16 %v636
    %v669 = vunpack.c.l.b16 %v637
    %v670 = vunpack.c.l.b16 %v638
    %v671 = vpack.c.b16 %v656, %v655
    %v672 = vpack.c.b16 %v658, %v657
    %v673 = vpack.c.b16 %v660, %v659
    %v674 = vpack.c.b16 %v662, %v661
    %v675 = vpack.c.b16 %v664, %v663
    %v676 = vpack.c.b16 %v666, %v665
    %v677 = vpack.c.b16 %v668, %v667
    %v678 = vpack.c.b16 %v670, %v669
    %687 = vmatpush.bf16.msra.mxu0 %v678
    %688 = vmatpush.bf16.msra.mxu0 %v677
    %689 = vmatpush.bf16.msra.mxu0 %v676
    %690 = vmatpush.bf16.msra.mxu0 %v675
    %691 = vmatpush.bf16.msra.mxu0 %v674
    %692 = vmatpush.bf16.msra.mxu0 %v673
    %693 = vmatpush.bf16.msra.mxu0 %v672
    %694 = vmatpush.bf16.msra.mxu0 %v671
    %695 = vmatmul.bf16.gmra.mxu0 %v621
    %v696 = vpop.f32.mrf.mxu0
    %v697 = vadd.f32 0.0, %v696
    %v698 = vpop.f32.mrf.mxu0
    %v699 = vadd.f32 0.0, %v698
    %700 = vdwg.mxu0
    %v701 = vmul.f32 %v697, 0.01
    %v702 = vmul.f32 %v699, 0.01
    %v703 = vmax.f32 %v697, %v701
    %v704 = vmax.f32 %v699, %v702
    %v705 = vpack.c.bf16 %v704, %v703
    %s706 = scalar_lea.vmem [#allocation5], 512
    %v707 = vld [vmem:[%s706] sm:$0xf]
    %v708 = vld [vmem:[%s706 + $0x4] sm:$0xf]
    %v709 = vld [vmem:[%s706 + $0x8] sm:$0xf]
    %v710 = vld [vmem:[%s706 + $0xc] sm:$0xf]
    %v711 = vld [vmem:[%s706 + $0x10] sm:$0xf]
    %v712 = vld [vmem:[%s706 + $0x14] sm:$0xf]
    %v713 = vld [vmem:[%s706 + $0x18] sm:$0xf]
    %v714 = vld [vmem:[%s706 + $0x1c] sm:$0xf]
    %v715 = vld [vmem:[%s706 + $0x20] sm:$0xf]
    %v716 = vld [vmem:[%s706 + $0x24] sm:$0xf]
    %v717 = vld [vmem:[%s706 + $0x28] sm:$0xf]
    %v718 = vld [vmem:[%s706 + $0x2c] sm:$0xf]
    %v719 = vld [vmem:[%s706 + $0x30] sm:$0xf]
    %v720 = vld [vmem:[%s706 + $0x34] sm:$0xf]
    %v721 = vld [vmem:[%s706 + $0x38] sm:$0xf]
    %v722 = vld [vmem:[%s706 + $0x3c] sm:$0xf]
    %v739 = vunpack.c.l.b16 %v707
    %v740 = vunpack.c.l.b16 %v708
    %v741 = vunpack.c.l.b16 %v709
    %v742 = vunpack.c.l.b16 %v710
    %v743 = vunpack.c.l.b16 %v711
    %v744 = vunpack.c.l.b16 %v712
    %v745 = vunpack.c.l.b16 %v713
    %v746 = vunpack.c.l.b16 %v714
    %v747 = vunpack.c.l.b16 %v715
    %v748 = vunpack.c.l.b16 %v716
    %v749 = vunpack.c.l.b16 %v717
    %v750 = vunpack.c.l.b16 %v718
    %v751 = vunpack.c.l.b16 %v719
    %v752 = vunpack.c.l.b16 %v720
    %v753 = vunpack.c.l.b16 %v721
    %v754 = vunpack.c.l.b16 %v722
    %v755 = vpack.c.b16 %v740, %v739
    %v756 = vpack.c.b16 %v742, %v741
    %v757 = vpack.c.b16 %v744, %v743
    %v758 = vpack.c.b16 %v746, %v745
    %v759 = vpack.c.b16 %v748, %v747
    %v760 = vpack.c.b16 %v750, %v749
    %v761 = vpack.c.b16 %v752, %v751
    %v762 = vpack.c.b16 %v754, %v753
    %771 = vmatpush.bf16.msra.mxu0 %v762
    %772 = vmatpush.bf16.msra.mxu0 %v761
    %773 = vmatpush.bf16.msra.mxu0 %v760
    %774 = vmatpush.bf16.msra.mxu0 %v759
    %775 = vmatpush.bf16.msra.mxu0 %v758
    %776 = vmatpush.bf16.msra.mxu0 %v757
    %777 = vmatpush.bf16.msra.mxu0 %v756
    %778 = vmatpush.bf16.msra.mxu0 %v755
    %779 = vmatmul.bf16.gmra.mxu0 %v705
    %v780 = vpop.f32.mrf.mxu0
    %v781 = vadd.f32 0.0, %v780
    %v782 = vpop.f32.mrf.mxu0
    %v783 = vadd.f32 0.0, %v782
    %784 = vdwg.mxu0
    %v785 = vmul.f32 %v781, 0.01
    %v786 = vmul.f32 %v783, 0.01
    %v787 = vmax.f32 %v781, %v785
    %v788 = vmax.f32 %v783, %v786
    %v789 = vpack.c.bf16 %v788, %v787
    %s790 = scalar_lea.vmem [#allocation5], 576
    %v791 = vld [vmem:[%s790] sm:$0xf]
    %v792 = vld [vmem:[%s790 + $0x4] sm:$0xf]
    %v793 = vld [vmem:[%s790 + $0x8] sm:$0xf]
    %v794 = vld [vmem:[%s790 + $0xc] sm:$0xf]
    %v795 = vld [vmem:[%s790 + $0x10] sm:$0xf]
    %v796 = vld [vmem:[%s790 + $0x14] sm:$0xf]
    %v797 = vld [vmem:[%s790 + $0x18] sm:$0xf]
    %v798 = vld [vmem:[%s790 + $0x1c] sm:$0xf]
    %v799 = vld [vmem:[%s790 + $0x20] sm:$0xf]
    %v800 = vld [vmem:[%s790 + $0x24] sm:$0xf]
    %v801 = vld [vmem:[%s790 + $0x28] sm:$0xf]
    %v802 = vld [vmem:[%s790 + $0x2c] sm:$0xf]
    %v803 = vld [vmem:[%s790 + $0x30] sm:$0xf]
    %v804 = vld [vmem:[%s790 + $0x34] sm:$0xf]
    %v805 = vld [vmem:[%s790 + $0x38] sm:$0xf]
    %v806 = vld [vmem:[%s790 + $0x3c] sm:$0xf]
    %v823 = vunpack.c.l.b16 %v791
    %v824 = vunpack.c.l.b16 %v792
    %v825 = vunpack.c.l.b16 %v793
    %v826 = vunpack.c.l.b16 %v794
    %v827 = vunpack.c.l.b16 %v795
    %v828 = vunpack.c.l.b16 %v796
    %v829 = vunpack.c.l.b16 %v797
    %v830 = vunpack.c.l.b16 %v798
    %v831 = vunpack.c.l.b16 %v799
    %v832 = vunpack.c.l.b16 %v800
    %v833 = vunpack.c.l.b16 %v801
    %v834 = vunpack.c.l.b16 %v802
    %v835 = vunpack.c.l.b16 %v803
    %v836 = vunpack.c.l.b16 %v804
    %v837 = vunpack.c.l.b16 %v805
    %v838 = vunpack.c.l.b16 %v806
    %v839 = vpack.c.b16 %v824, %v823
    %v840 = vpack.c.b16 %v826, %v825
    %v841 = vpack.c.b16 %v828, %v827
    %v842 = vpack.c.b16 %v830, %v829
    %v843 = vpack.c.b16 %v832, %v831
    %v844 = vpack.c.b16 %v834, %v833
    %v845 = vpack.c.b16 %v836, %v835
    %v846 = vpack.c.b16 %v838, %v837
    %855 = vmatpush.bf16.msra.mxu0 %v846
    %856 = vmatpush.bf16.msra.mxu0 %v845
    %857 = vmatpush.bf16.msra.mxu0 %v844
    %858 = vmatpush.bf16.msra.mxu0 %v843
    %859 = vmatpush.bf16.msra.mxu0 %v842
    %860 = vmatpush.bf16.msra.mxu0 %v841
    %861 = vmatpush.bf16.msra.mxu0 %v840
    %862 = vmatpush.bf16.msra.mxu0 %v839
    %863 = vmatmul.bf16.gmra.mxu0 %v789
    %v864 = vpop.f32.mrf.mxu0
    %v865 = vadd.f32 0.0, %v864
    %v866 = vpop.f32.mrf.mxu0
    %v867 = vadd.f32 0.0, %v866
    %868 = vdwg.mxu0
    %v869 = vmul.f32 %v865, 0.01
    %v870 = vmul.f32 %v867, 0.01
    %v871 = vmax.f32 %v865, %v869
    %v872 = vmax.f32 %v867, %v870
    %v873 = vpack.c.bf16 %v872, %v871
    %s874 = scalar_lea.vmem [#allocation5], 640
    %v875 = vld [vmem:[%s874] sm:$0xf]
    %v876 = vld [vmem:[%s874 + $0x4] sm:$0xf]
    %v877 = vld [vmem:[%s874 + $0x8] sm:$0xf]
    %v878 = vld [vmem:[%s874 + $0xc] sm:$0xf]
    %v879 = vld [vmem:[%s874 + $0x10] sm:$0xf]
    %v880 = vld [vmem:[%s874 + $0x14] sm:$0xf]
    %v881 = vld [vmem:[%s874 + $0x18] sm:$0xf]
    %v882 = vld [vmem:[%s874 + $0x1c] sm:$0xf]
    %v883 = vld [vmem:[%s874 + $0x20] sm:$0xf]
    %v884 = vld [vmem:[%s874 + $0x24] sm:$0xf]
    %v885 = vld [vmem:[%s874 + $0x28] sm:$0xf]
    %v886 = vld [vmem:[%s874 + $0x2c] sm:$0xf]
    %v887 = vld [vmem:[%s874 + $0x30] sm:$0xf]
    %v888 = vld [vmem:[%s874 + $0x34] sm:$0xf]
    %v889 = vld [vmem:[%s874 + $0x38] sm:$0xf]
    %v890 = vld [vmem:[%s874 + $0x3c] sm:$0xf]
    %v907 = vunpack.c.l.b16 %v875
    %v908 = vunpack.c.l.b16 %v876
    %v909 = vunpack.c.l.b16 %v877
    %v910 = vunpack.c.l.b16 %v878
    %v911 = vunpack.c.l.b16 %v879
    %v912 = vunpack.c.l.b16 %v880
    %v913 = vunpack.c.l.b16 %v881
    %v914 = vunpack.c.l.b16 %v882
    %v915 = vunpack.c.l.b16 %v883
    %v916 = vunpack.c.l.b16 %v884
    %v917 = vunpack.c.l.b16 %v885
    %v918 = vunpack.c.l.b16 %v886
    %v919 = vunpack.c.l.b16 %v887
    %v920 = vunpack.c.l.b16 %v888
    %v921 = vunpack.c.l.b16 %v889
    %v922 = vunpack.c.l.b16 %v890
    %v923 = vpack.c.b16 %v908, %v907
    %v924 = vpack.c.b16 %v910, %v909
    %v925 = vpack.c.b16 %v912, %v911
    %v926 = vpack.c.b16 %v914, %v913
    %v927 = vpack.c.b16 %v916, %v915
    %v928 = vpack.c.b16 %v918, %v917
    %v929 = vpack.c.b16 %v920, %v919
    %v930 = vpack.c.b16 %v922, %v921
    %939 = vmatpush.bf16.msra.mxu0 %v930
    %940 = vmatpush.bf16.msra.mxu0 %v929
    %941 = vmatpush.bf16.msra.mxu0 %v928
    %942 = vmatpush.bf16.msra.mxu0 %v927
    %943 = vmatpush.bf16.msra.mxu0 %v926
    %944 = vmatpush.bf16.msra.mxu0 %v925
    %945 = vmatpush.bf16.msra.mxu0 %v924
    %946 = vmatpush.bf16.msra.mxu0 %v923
    %947 = vmatmul.bf16.gmra.mxu0 %v873
    %v948 = vpop.f32.mrf.mxu0
    %v949 = vadd.f32 0.0, %v948
    %v950 = vpop.f32.mrf.mxu0
    %v951 = vadd.f32 0.0, %v950
    %952 = vdwg.mxu0
    %v953 = vmul.f32 %v949, 0.01
    %v954 = vmul.f32 %v951, 0.01
    %v955 = vmax.f32 %v949, %v953
    %v956 = vmax.f32 %v951, %v954
    %v957 = vpack.c.bf16 %v956, %v955
    %s958 = scalar_lea.vmem [#allocation5], 704
    %v959 = vld [vmem:[%s958] sm:$0xf]
    %v960 = vld [vmem:[%s958 + $0x4] sm:$0xf]
    %v961 = vld [vmem:[%s958 + $0x8] sm:$0xf]
    %v962 = vld [vmem:[%s958 + $0xc] sm:$0xf]
    %v963 = vld [vmem:[%s958 + $0x10] sm:$0xf]
    %v964 = vld [vmem:[%s958 + $0x14] sm:$0xf]
    %v965 = vld [vmem:[%s958 + $0x18] sm:$0xf]
    %v966 = vld [vmem:[%s958 + $0x1c] sm:$0xf]
    %v967 = vld [vmem:[%s958 + $0x20] sm:$0xf]
    %v968 = vld [vmem:[%s958 + $0x24] sm:$0xf]
    %v969 = vld [vmem:[%s958 + $0x28] sm:$0xf]
    %v970 = vld [vmem:[%s958 + $0x2c] sm:$0xf]
    %v971 = vld [vmem:[%s958 + $0x30] sm:$0xf]
    %v972 = vld [vmem:[%s958 + $0x34] sm:$0xf]
    %v973 = vld [vmem:[%s958 + $0x38] sm:$0xf]
    %v974 = vld [vmem:[%s958 + $0x3c] sm:$0xf]
    %v991 = vunpack.c.l.b16 %v959
    %v992 = vunpack.c.l.b16 %v960
    %v993 = vunpack.c.l.b16 %v961
    %v994 = vunpack.c.l.b16 %v962
    %v995 = vunpack.c.l.b16 %v963
    %v996 = vunpack.c.l.b16 %v964
    %v997 = vunpack.c.l.b16 %v965
    %v998 = vunpack.c.l.b16 %v966
    %v999 = vunpack.c.l.b16 %v967
    %v1000 = vunpack.c.l.b16 %v968
    %v1001 = vunpack.c.l.b16 %v969
    %v1002 = vunpack.c.l.b16 %v970
    %v1003 = vunpack.c.l.b16 %v971
    %v1004 = vunpack.c.l.b16 %v972
    %v1005 = vunpack.c.l.b16 %v973
    %v1006 = vunpack.c.l.b16 %v974
    %v1007 = vpack.c.b16 %v992, %v991
    %v1008 = vpack.c.b16 %v994, %v993
    %v1009 = vpack.c.b16 %v996, %v995
    %v1010 = vpack.c.b16 %v998, %v997
    %v1011 = vpack.c.b16 %v1000, %v999
    %v1012 = vpack.c.b16 %v1002, %v1001
    %v1013 = vpack.c.b16 %v1004, %v1003
    %v1014 = vpack.c.b16 %v1006, %v1005
    %1023 = vmatpush.bf16.msra.mxu0 %v1014
    %1024 = vmatpush.bf16.msra.mxu0 %v1013
    %1025 = vmatpush.bf16.msra.mxu0 %v1012
    %1026 = vmatpush.bf16.msra.mxu0 %v1011
    %1027 = vmatpush.bf16.msra.mxu0 %v1010
    %1028 = vmatpush.bf16.msra.mxu0 %v1009
    %1029 = vmatpush.bf16.msra.mxu0 %v1008
    %1030 = vmatpush.bf16.msra.mxu0 %v1007
    %1031 = vmatmul.bf16.gmra.mxu0 %v957
    %v1032 = vpop.f32.mrf.mxu0
    %v1033 = vadd.f32 0.0, %v1032
    %v1034 = vpop.f32.mrf.mxu0
    %v1035 = vadd.f32 0.0, %v1034
    %1036 = vdwg.mxu0
    %1037 = vst.msk [vmem:[#allocation7] sm:$0xff] %vm91, %v1033
    %1038 = vst.msk [vmem:[#allocation7 + $0x8] sm:$0xff] %vm91, %v1035
    // Predicated region
    $region22: #{aefc_forward.1} parent=1 // pred_check
      _
    $region23: #{aefc_forward.1} parent=1 // pred_check_branch
      %1040 = sbr.rel (0) target = $region25
    $region24: #{aefc_forward.1} parent=1 // pred_region
      %1042 = vsyncadd [#allocation4], 128
      %s1043 = sshll.u32 [#allocation7], 4
      %s1044 = int_to_ptr.vmem [resolvable:$true] %s1043
      %s1045 = sshll.u32 %s3, 4
      %s1046 = int_to_ptr.hbm [resolvable:$true] %s1045
      %1051 = dma.vmem_to_hbm [thread:$0]  %s1044, 128, %s1046, [#allocation4], 128, 128, 8
    $region25: #{aefc_forward.1} parent=1 // pred_fallthru
      _
    // Predicated region
    $region26: #{aefc_forward.1} parent=1 // pred_check
      _
    $region27: #{aefc_forward.1} parent=1 // pred_check_branch
      %1053 = sbr.rel (0) target = $region29
    $region28: #{aefc_forward.1} parent=1 // pred_region
      %1055 = dma.done [#allocation4], 256
    $region29: #{aefc_forward.1} parent=1 // pred_fallthru
      _
    %1056 = vsyncpa [#allocation3], 1
    %1057 = vsyncpa [#allocation6], 1
    %1058 = vsyncpa [#allocation4], 1

</llo_original>
